<compile_context>
chip_gen: v7x
topology: tpu7x:2x2x1
jax: 0.10.0
libtpu: 0.0.40
codegen_flags: <defaults>
</compile_context>

<pallas_src>
import jax
import jax.numpy as jnp
from jax.experimental import pallas as pl
from jax.experimental.pallas import tpu as pltpu

LANE = 128
SUBLANE = 8


def _round_up(n, m):
    return ((n + m - 1) // m) * m


def _pad2(arr, rows, cols, dtype):
    buf = jnp.zeros((rows, cols), dtype)
    return buf.at[:arr.shape[0], :arr.shape[1]].set(arr.astype(dtype))


# ----------------------------------------------------------------------------
# Pallas kernel: fused GCN stack + relu + mean-pool + output linear
# ----------------------------------------------------------------------------
def _make_net_kernel(num_conv):
    def kernel(x_ref, a_ref, pool_ref, wstack_ref, bstack_ref,
               wout_ref, bout_ref, out_ref):
        a = a_ref[...]                       # (Np, Np) bf16 normalized adjacency
        h = x_ref[...]                       # (Np, Hp) bf16 node features
        b_all = bstack_ref[...]              # (num_conv, Hp) f32 conv biases

        # GCNConv layers: h' = relu(A_hat @ (h @ W) + b); relu after every conv
        # matches the original (activation between convs + final h.relu()).
        for l in range(num_conv):
            w = wstack_ref[l]                # (Hp, Hp) bf16 (zero-padded; exact)
            xw = jnp.dot(h, w, preferred_element_type=jnp.float32)
            h_f32 = jnp.dot(a, xw.astype(jnp.bfloat16),
                            preferred_element_type=jnp.float32) + b_all[l:l + 1, :]
            h = jnp.maximum(h_f32, 0.0).astype(jnp.bfloat16)

        # global_mean_pool(h, batch) == P @ h  (P rows = 1/|graph| indicator)
        pooled = jnp.dot(pool_ref[...], h, preferred_element_type=jnp.float32)

        # out_layer: Linear(hidden, num_classes)  (dropout is identity in eval)
        logits = jnp.dot(pooled.astype(jnp.bfloat16), wout_ref[...],
                         preferred_element_type=jnp.float32) + bout_ref[...]
        out_ref[...] = logits.astype(out_ref.dtype)

    return kernel


# ----------------------------------------------------------------------------
# One-time preparation: build padded bf16 operands (hoisted out of the hot path)
# ----------------------------------------------------------------------------
def build_dense_gcn_adjacency_padded(edge_index, num_nodes, padded_nodes):
    """PyG-style GCN normalization built directly at the padded (Np, Np) shape:
    A_hat = D^-1/2 (A + I) D^-1/2 with A[dst, src] = 1 per directed edge (no
    symmetrization) and self loops only on real nodes. Padded rows/cols are
    exactly zero, so they never leak into real outputs."""
    src, dst = edge_index
    a = jnp.zeros((padded_nodes, padded_nodes), jnp.float32)
    a = a.at[dst, src].set(1.0)
    diag = (jnp.arange(padded_nodes) < num_nodes).astype(jnp.float32)
    a_tilde = a + jnp.diag(diag)                       # self loops (real nodes only)
    deg = a_tilde.sum(axis=1)
    dinv = jnp.where(deg > 0, jax.lax.rsqrt(deg), 0.0)
    return (dinv[:, None] * a_tilde * dinv[None, :]).astype(jnp.bfloat16)


def build_mean_pool_matrix_padded(batch, num_graphs, padded_graphs, padded_nodes):
    """Mean-pool matrix built directly at the padded (Gp, Np) shape (bf16).
    Padded nodes are assigned graph -1 so padded rows/cols stay exactly zero."""
    batch_p = jnp.full((padded_nodes,), -1, jnp.int32).at[:batch.shape[0]].set(batch)
    onehot = (batch_p[None, :] == jnp.arange(padded_graphs)[:, None]).astype(jnp.float32)
    counts = jnp.maximum(onehot.sum(axis=1, keepdims=True), 1.0)
    return (onehot / counts).astype(jnp.bfloat16)


def prepare_net_inputs(x, edge_index, batch, num_graphs, conv_params, w_out, b_out):
    """Pad / cast everything ONCE (init-time).  Returns padded operands + dims."""
    N, F_in = x.shape
    hidden = conv_params[0][0].shape[1]
    C = w_out.shape[1]
    num_conv = len(conv_params)

    Np = _round_up(N, SUBLANE)                     # sublane alignment only (64 -> 64)
    Hp = _round_up(max(F_in, hidden), LANE)        # shared K/hidden pad (9,32 -> 128)
    Cp = _round_up(C, LANE)                        # lane-dense output (10 -> 128)
    Gp = _round_up(num_graphs, SUBLANE)            # (4 -> 8)

    x_p = _pad2(x, Np, Hp, jnp.bfloat16)
    a_p = build_dense_gcn_adjacency_padded(edge_index, N, Np)
    pool_p = build_mean_pool_matrix_padded(batch, num_graphs, Gp, Np)

    # Stack conv weights/biases into single operands (fewer DMAs per call).
    w_stack = jnp.stack([_pad2(w, Hp, Hp, jnp.bfloat16) for w, _ in conv_params])
    b_stack = jnp.stack([_pad2(b, 1, Hp, jnp.float32)[0] for _, b in conv_params])

    wout_p = _pad2(w_out, Hp, Cp, jnp.bfloat16)
    bout_p = _pad2(b_out, 1, Cp, jnp.float32)

    operands = (x_p, a_p, pool_p, w_stack, b_stack, wout_p, bout_p)
    operands = jax.tree_util.tree_map(jax.block_until_ready, operands)
    dims = dict(num_conv=num_conv, G=num_graphs, C=C, Np=Np, Hp=Hp, Cp=Cp, Gp=Gp)
    return operands, dims


# ----------------------------------------------------------------------------
# Forward: single fused pallas_call on pre-padded operands
# ----------------------------------------------------------------------------
def net_forward_pallas(padded_operands, dims):
    num_conv = dims["num_conv"]
    Np, Hp, Cp, Gp = dims["Np"], dims["Hp"], dims["Cp"], dims["Gp"]

    # Advisory cost estimate (padded shapes) for the XLA scheduler.
    flops = num_conv * (2 * Np * Hp * Hp + 2 * Np * Np * Hp)
    flops += 2 * Gp * Np * Hp + 2 * Gp * Hp * Cp
    bytes_accessed = sum(int(a.size) * a.dtype.itemsize for a in padded_operands)
    bytes_accessed += Gp * Cp * 4

    vmem_spec = pl.BlockSpec(memory_space=pltpu.MemorySpace.VMEM)
    out_p = pl.pallas_call(
        _make_net_kernel(num_conv),
        out_shape=jax.ShapeDtypeStruct((Gp, Cp), jnp.float32),
        in_specs=[vmem_spec] * len(padded_operands),
        out_specs=vmem_spec,
        cost_estimate=pl.CostEstimate(
            flops=flops, transcendentals=0, bytes_accessed=bytes_accessed),
    )(*padded_operands)

    return out_p[:dims["G"], :dims["C"]]


# ----------------------------------------------------------------------------
# Pure-JAX reference (f32, unpadded) for a correctness check
# ----------------------------------------------------------------------------
def build_dense_gcn_adjacency(edge_index, num_nodes):
    src, dst = edge_index
    a = jnp.zeros((num_nodes, num_nodes), jnp.float32)
    a = a.at[dst, src].set(1.0)
    a_tilde = a + jnp.eye(num_nodes, dtype=jnp.float32)
    deg = a_tilde.sum(axis=1)
    dinv = jnp.where(deg > 0, jax.lax.rsqrt(deg), 0.0)
    return dinv[:, None] * a_tilde * dinv[None, :]


def build_mean_pool_matrix(batch, num_graphs, num_nodes):
    onehot = (batch[None, :] == jnp.arange(num_graphs)[:, None]).astype(jnp.float32)
    counts = jnp.maximum(onehot.sum(axis=1, keepdims=True), 1.0)
    return onehot / counts


def net_forward_ref(x, a_hat, pool, conv_params, w_out, b_out):
    h = x
    for l, (w, b) in enumerate(conv_params):
        if l > 0:
            h = jnp.maximum(h, 0.0)
        h = a_hat @ (h @ w) + b
    h = jnp.maximum(h, 0.0)
    pooled = pool @ h
    return pooled @ w_out + b_out


def glorot(key, shape):
    fan_in, fan_out = shape[0], shape[1]
    limit = (6.0 / (fan_in + fan_out)) ** 0.5
    return jax.random.uniform(key, shape, jnp.float32, -limit, limit)


if __name__ == "__main__":
    # Small synthetic "Peptides-func"-like setup:
    #   num_features = 9, num_classes = 10, hidden = 32, num_layer = 3
    NUM_FEATURES = 9
    NUM_CLASSES = 10
    HIDDEN = 32
    NUM_LAYER = 3               # => NUM_LAYER - 1 = 2 GCNConv layers
    NODES_PER_GRAPH = 16
    NUM_GRAPHS = 4
    N = NODES_PER_GRAPH * NUM_GRAPHS   # 64 nodes total

    key = jax.random.PRNGKey(0)
    k_x, k_e, k_w = jax.random.split(key, 3)

    # Node features.
    x = jax.random.normal(k_x, (N, NUM_FEATURES), jnp.float32)

    # Synthetic edge_index (within-graph random edges), like PyG's (2, E) int array.
    E = 256
    k_src, k_off = jax.random.split(k_e)
    src = jax.random.randint(k_src, (E,), 0, N)
    offs = jax.random.randint(k_off, (E,), 1, NODES_PER_GRAPH)
    dst = (src // NODES_PER_GRAPH) * NODES_PER_GRAPH + (src % NODES_PER_GRAPH + offs) % NODES_PER_GRAPH
    edge_index = jnp.stack([src, dst], axis=0)

    # Graph assignment vector (batch).
    batch = jnp.repeat(jnp.arange(NUM_GRAPHS), NODES_PER_GRAPH)

    # Deterministic parameter init (synthetic, no checkpoint load).
    num_conv = NUM_LAYER - 1
    wkeys = jax.random.split(k_w, num_conv + 1)
    conv_params = []
    fin = NUM_FEATURES
    for l in range(num_conv):
        w = glorot(wkeys[l], (fin, HIDDEN))               # GCNConv weight (glorot)
        b = jnp.zeros((1, HIDDEN), jnp.float32)           # GCNConv bias (zeros)
        conv_params.append((w, b))
        fin = HIDDEN
    # out_layer Linear(hidden, num_classes): store W already transposed (hidden, C).
    w_out = glorot(wkeys[-1], (HIDDEN, NUM_CLASSES))
    b_out = jnp.zeros((1, NUM_CLASSES), jnp.float32)

    # One-time padded operand construction (hoisted out of the per-call path).
    padded_operands, dims = prepare_net_inputs(
        x, edge_index, batch, NUM_GRAPHS, conv_params, w_out, b_out)

    out = net_forward_pallas(padded_operands, dims)
    out = jax.block_until_ready(out)

    a_hat_ref = build_dense_gcn_adjacency(edge_index, N)
    pool_ref = build_mean_pool_matrix(batch, NUM_GRAPHS, N)
    ref = net_forward_ref(x, a_hat_ref, pool_ref, conv_params, w_out, b_out)

    assert out.shape == (NUM_GRAPHS, NUM_CLASSES)
    # Kernel feeds the MXU bf16 operands (f32 accumulation), so allow bf16-level error.
    assert jnp.allclose(out, ref, rtol=5e-2, atol=5e-2), (
        f"mismatch vs reference, max abs diff = {jnp.max(jnp.abs(out - ref))}")

    print("KERNEL_OK")
</pallas_src>

<mosaic_0001>
module attributes {stable_mosaic.version = 11 : i64} {
  func.func @kernel(%arg0: memref<64x128xbf16, #tpu.memory_space<vmem>>, %arg1: memref<64x64xbf16, #tpu.memory_space<vmem>>, %arg2: memref<8x64xbf16, #tpu.memory_space<vmem>>, %arg3: memref<2x128x128xbf16, #tpu.memory_space<vmem>>, %arg4: memref<2x128xf32, #tpu.memory_space<vmem>>, %arg5: memref<128x128xbf16, #tpu.memory_space<vmem>>, %arg6: memref<1x128xf32, #tpu.memory_space<vmem>>, %arg7: memref<8x128xf32, #tpu.memory_space<vmem>>) attributes {dimension_semantics = [], scalar_prefetch = 0 : i64, scratch_operands = 0 : i64, tpu.core_type = #tpu.core_type<tc>} {
    %c0 = arith.constant 0 : index
    %c0_0 = arith.constant 0 : index
    %0 = vector.load %arg1[%c0, %c0_0] : memref<64x64xbf16, #tpu.memory_space<vmem>>, vector<64x64xbf16>
    %c0_1 = arith.constant 0 : index
    %c0_2 = arith.constant 0 : index
    %1 = vector.load %arg0[%c0_1, %c0_2] : memref<64x128xbf16, #tpu.memory_space<vmem>>, vector<64x128xbf16>
    %c0_3 = arith.constant 0 : index
    %c0_4 = arith.constant 0 : index
    %2 = vector.load %arg4[%c0_3, %c0_4] : memref<2x128xf32, #tpu.memory_space<vmem>>, vector<2x128xf32>
    %c0_5 = arith.constant 0 : index
    %c0_6 = arith.constant 0 : index
    %c0_7 = arith.constant 0 : index
    %3 = vector.load %arg3[%c0_5, %c0_6, %c0_7] : memref<2x128x128xbf16, #tpu.memory_space<vmem>>, vector<1x128x128xbf16>
    %4 = vector.shape_cast %3 : vector<1x128x128xbf16> to vector<128x128xbf16>
    %cst = arith.constant dense<0.000000e+00> : vector<64x128xf32>
    %5 = tpu.matmul %1, %4, %cst {dimension_numbers = #tpu.dot_dimension_numbers<[1], [0], [0], [1], [0, 0, 1, 1], [], []>} : vector<64x128xbf16>, vector<128x128xbf16>, vector<64x128xf32> -> vector<64x128xf32>
    %6 = arith.truncf %5 : vector<64x128xf32> to vector<64x128xbf16>
    %cst_8 = arith.constant dense<0.000000e+00> : vector<64x128xf32>
    %7 = tpu.matmul %0, %6, %cst_8 {dimension_numbers = #tpu.dot_dimension_numbers<[1], [0], [0], [1], [0, 0, 1, 1], [], []>} : vector<64x64xbf16>, vector<64x128xbf16>, vector<64x128xf32> -> vector<64x128xf32>
    %8 = vector.extract_strided_slice %2 {offsets = [0, 0], sizes = [1, 128], strides = [1, 1]} : vector<2x128xf32> to vector<1x128xf32>
    %9 = vector.broadcast %8 : vector<1x128xf32> to vector<64x128xf32>
    %10 = arith.addf %7, %9 : vector<64x128xf32>
    %cst_9 = arith.constant 0.000000e+00 : f32
    %11 = vector.broadcast %cst_9 : f32 to vector<64x128xf32>
    %12 = arith.maximumf %10, %11 : vector<64x128xf32>
    %13 = arith.truncf %12 : vector<64x128xf32> to vector<64x128xbf16>
    %c1 = arith.constant 1 : index
    %c0_10 = arith.constant 0 : index
    %c0_11 = arith.constant 0 : index
    %14 = vector.load %arg3[%c1, %c0_10, %c0_11] : memref<2x128x128xbf16, #tpu.memory_space<vmem>>, vector<1x128x128xbf16>
    %15 = vector.shape_cast %14 : vector<1x128x128xbf16> to vector<128x128xbf16>
    %cst_12 = arith.constant dense<0.000000e+00> : vector<64x128xf32>
    %16 = tpu.matmul %13, %15, %cst_12 {dimension_numbers = #tpu.dot_dimension_numbers<[1], [0], [0], [1], [0, 0, 1, 1], [], []>} : vector<64x128xbf16>, vector<128x128xbf16>, vector<64x128xf32> -> vector<64x128xf32>
    %17 = arith.truncf %16 : vector<64x128xf32> to vector<64x128xbf16>
    %cst_13 = arith.constant dense<0.000000e+00> : vector<64x128xf32>
    %18 = tpu.matmul %0, %17, %cst_13 {dimension_numbers = #tpu.dot_dimension_numbers<[1], [0], [0], [1], [0, 0, 1, 1], [], []>} : vector<64x64xbf16>, vector<64x128xbf16>, vector<64x128xf32> -> vector<64x128xf32>
    %19 = vector.extract_strided_slice %2 {offsets = [1, 0], sizes = [1, 128], strides = [1, 1]} : vector<2x128xf32> to vector<1x128xf32>
    %20 = vector.broadcast %19 : vector<1x128xf32> to vector<64x128xf32>
    %21 = arith.addf %18, %20 : vector<64x128xf32>
    %cst_14 = arith.constant 0.000000e+00 : f32
    %22 = vector.broadcast %cst_14 : f32 to vector<64x128xf32>
    %23 = arith.maximumf %21, %22 : vector<64x128xf32>
    %24 = arith.truncf %23 : vector<64x128xf32> to vector<64x128xbf16>
    %c0_15 = arith.constant 0 : index
    %c0_16 = arith.constant 0 : index
    %25 = vector.load %arg2[%c0_15, %c0_16] : memref<8x64xbf16, #tpu.memory_space<vmem>>, vector<8x64xbf16>
    %cst_17 = arith.constant dense<0.000000e+00> : vector<8x128xf32>
    %26 = tpu.matmul %25, %24, %cst_17 {dimension_numbers = #tpu.dot_dimension_numbers<[1], [0], [0], [1], [0, 0, 1, 1], [], []>} : vector<8x64xbf16>, vector<64x128xbf16>, vector<8x128xf32> -> vector<8x128xf32>
    %27 = arith.truncf %26 : vector<8x128xf32> to vector<8x128xbf16>
    %c0_18 = arith.constant 0 : index
    %c0_19 = arith.constant 0 : index
    %28 = vector.load %arg5[%c0_18, %c0_19] : memref<128x128xbf16, #tpu.memory_space<vmem>>, vector<128x128xbf16>
    %cst_20 = arith.constant dense<0.000000e+00> : vector<8x128xf32>
    %29 = tpu.matmul %27, %28, %cst_20 {dimension_numbers = #tpu.dot_dimension_numbers<[1], [0], [0], [1], [0, 0, 1, 1], [], []>} : vector<8x128xbf16>, vector<128x128xbf16>, vector<8x128xf32> -> vector<8x128xf32>
    %c0_21 = arith.constant 0 : index
    %c0_22 = arith.constant 0 : index
    %30 = vector.load %arg6[%c0_21, %c0_22] : memref<1x128xf32, #tpu.memory_space<vmem>>, vector<1x128xf32>
    %31 = vector.broadcast %30 : vector<1x128xf32> to vector<8x128xf32>
    %32 = arith.addf %29, %31 : vector<8x128xf32>
    %c0_23 = arith.constant 0 : index
    %c0_24 = arith.constant 0 : index
    %33 = vector.load %arg7[%c0_23, %c0_24] : memref<8x128xf32, #tpu.memory_space<vmem>>, vector<8x128xf32>
    tpu.vector_store %arg7[%c0_23, %c0_24], %32 {strides = array<i32>} : memref<8x128xf32, #tpu.memory_space<vmem>>, vector<8x128xf32>,
    return
  }
}

</mosaic_0001>

<llo_original>
// kernel: tpu_custom_call.1
$region0: #{tpu_custom_call.1}
  #allocation0 [shape = 'u32[]', space=smem, size = 0x4, offset = 0x4, fixed_abs, tag = 'smem constant byte address 0x4 - core index']
  #allocation1 [shape = 'u32[144,128]{1,0:T(1,128)}', space=vmem, size = 0x12000, scoped, tag = 'internal scratch']
  %s0 = inlined_call_operand.hbm [shape: bf16[64,128], index: 0, kind: input, shape index: {}]
  %s1 = inlined_call_operand.hbm [shape: bf16[64,64], index: 1, kind: input, shape index: {}]
  %s2 = inlined_call_operand.vmem [shape: bf16[8,64], index: 2, kind: input, shape index: {}]
  %s3 = inlined_call_operand.hbm [shape: bf16[2,128,128], index: 3, kind: input, shape index: {}]
  %s4 = inlined_call_operand.vmem [shape: f32[2,128], index: 4, kind: input, shape index: {}]
  %s5 = inlined_call_operand.hbm [shape: bf16[128,128], index: 5, kind: input, shape index: {}]
  %s6 = inlined_call_operand.vmem [shape: f32[1,128], index: 6, kind: input, shape index: {}]
  %s7 = inlined_call_operand.hbm [shape: f32[8,128], index: 7, kind: output, shape index: {}]
  %s8 = sld [smem:[#allocation0]]
  $region54: #{tpu_custom_call.1} parent=0
    _
  %s10 = ssub.s32 1, %s8
  %s11 = scalar_select 0, %s10, %s8
  $region1: #{tpu_custom_call.1} parent=0
    #allocation2 [shape = 'u8[16384]{0}', space=vmem, size = 0x4000, scoped, tag = 'input window, operand 0, single buffered']
    #allocation3 [shape = 's32[1]{0}', space=sflag, size = 0x4, scoped, tag = 'scoped memory for tpu_custom_call.1']
    #allocation4 [shape = 's32[1]{0}', space=sflag, size = 0x4, scoped, tag = 'scoped memory for tpu_custom_call.1']
    #allocation5 [shape = 'u8[16384]{0}', space=vmem, size = 0x4000, scoped, tag = 'input window, operand 1, single buffered']
    #allocation6 [shape = 's32[1]{0}', space=sflag, size = 0x4, scoped, tag = 'scoped memory for tpu_custom_call.1']
    #allocation7 [shape = 'u8[65536]{0}', space=vmem, size = 0x10000, scoped, tag = 'input window, operand 3, single buffered']
    #allocation8 [shape = 'u8[32768]{0}', space=vmem, size = 0x8000, scoped, tag = 'input window, operand 5, single buffered']
    #allocation9 [shape = 's32[1]{0}', space=sflag, size = 0x4, scoped, tag = 'scoped memory for tpu_custom_call.1']
    #allocation10 [shape = 'u8[4096]{0}', space=vmem, size = 0x1000, scoped, tag = 'output window, operand 0, single buffered']
    %12 = vsyncpa [#allocation3], 0
    %13 = vsyncpa [#allocation6], 0
    %14 = vsyncpa [#allocation9], 0
    %15 = vsyncpa [#allocation4], 0
    // Predicated region
    $region2: #{tpu_custom_call.1} parent=1 // pred_check
      _
    $region3: #{tpu_custom_call.1} parent=1 // pred_check_branch
      %17 = sbr.rel (0) target = $region5
    $region4: #{tpu_custom_call.1} parent=1 // pred_region
      %s19 = ssub.s32 512, 512
      %20 = vsyncadd [#allocation3], %s19
      %s21 = sshll.u32 [#allocation2], 4
      %s22 = int_to_ptr.vmem [resolvable:$true] %s21
      %27 = dma.hbm_to_vmem [thread:$0]  %s0, 512, %s22, [#allocation3], 64, 64, 4
    $region5: #{tpu_custom_call.1} parent=1 // pred_fallthru
      _
    // Predicated region
    $region6: #{tpu_custom_call.1} parent=1 // pred_check
      _
    $region7: #{tpu_custom_call.1} parent=1 // pred_check_branch
      %29 = sbr.rel (0) target = $region9
    $region8: #{tpu_custom_call.1} parent=1 // pred_region
      %s31 = ssub.s32 512, 512
      %32 = vsyncadd [#allocation6], %s31
      %s33 = sshll.u32 [#allocation5], 4
      %s34 = int_to_ptr.vmem [resolvable:$true] %s33
      %39 = dma.hbm_to_vmem [thread:$0]  %s1, 512, %s34, [#allocation6], 64, 64, 4
    $region9: #{tpu_custom_call.1} parent=1 // pred_fallthru
      _
    // Predicated region
    $region10: #{tpu_custom_call.1} parent=1 // pred_check
      _
    $region11: #{tpu_custom_call.1} parent=1 // pred_check_branch
      %41 = sbr.rel (0) target = $region13
    $region12: #{tpu_custom_call.1} parent=1 // pred_region
      _
    $region13: #{tpu_custom_call.1} parent=1 // pred_fallthru
      _
    // Predicated region
    $region14: #{tpu_custom_call.1} parent=1 // pred_check
      _
    $region15: #{tpu_custom_call.1} parent=1 // pred_check_branch
      %43 = sbr.rel (0) target = $region17
    $region16: #{tpu_custom_call.1} parent=1 // pred_region
      %s45 = ssub.s32 2048, 2048
      %46 = vsyncadd [#allocation6], %s45
      %s47 = sshll.u32 [#allocation7], 4
      %s48 = int_to_ptr.vmem [resolvable:$true] %s47
      %53 = dma.hbm_to_vmem [thread:$0]  %s3, 2048, %s48, [#allocation6], 64, 64, 4
    $region17: #{tpu_custom_call.1} parent=1 // pred_fallthru
      _
    // Predicated region
    $region18: #{tpu_custom_call.1} parent=1 // pred_check
      _
    $region19: #{tpu_custom_call.1} parent=1 // pred_check_branch
      %55 = sbr.rel (0) target = $region21
    $region20: #{tpu_custom_call.1} parent=1 // pred_region
      _
    $region21: #{tpu_custom_call.1} parent=1 // pred_fallthru
      _
    // Predicated region
    $region22: #{tpu_custom_call.1} parent=1 // pred_check
      _
    $region23: #{tpu_custom_call.1} parent=1 // pred_check_branch
      %57 = sbr.rel (0) target = $region25
    $region24: #{tpu_custom_call.1} parent=1 // pred_region
      %s59 = ssub.s32 1024, 1024
      %60 = vsyncadd [#allocation9], %s59
      %s61 = sshll.u32 [#allocation8], 4
      %s62 = int_to_ptr.vmem [resolvable:$true] %s61
      %67 = dma.hbm_to_vmem [thread:$0]  %s5, 1024, %s62, [#allocation9], 64, 64, 4
    $region25: #{tpu_custom_call.1} parent=1 // pred_fallthru
      _
    // Predicated region
    $region26: #{tpu_custom_call.1} parent=1 // pred_check
      _
    $region27: #{tpu_custom_call.1} parent=1 // pred_check_branch
      %69 = sbr.rel (0) target = $region29
    $region28: #{tpu_custom_call.1} parent=1 // pred_region
      _
    $region29: #{tpu_custom_call.1} parent=1 // pred_fallthru
      _
    // Predicated region
    $region30: #{tpu_custom_call.1} parent=1 // pred_check
      _
    $region31: #{tpu_custom_call.1} parent=1 // pred_check_branch
      %71 = sbr.rel (0) target = $region33
    $region32: #{tpu_custom_call.1} parent=1 // pred_region
      %72 = dma.done [#allocation3], 512
    $region33: #{tpu_custom_call.1} parent=1 // pred_fallthru
      _
    // Predicated region
    $region34: #{tpu_custom_call.1} parent=1 // pred_check
      _
    $region35: #{tpu_custom_call.1} parent=1 // pred_check_branch
      %74 = sbr.rel (0) target = $region37
    $region36: #{tpu_custom_call.1} parent=1 // pred_region
      %75 = dma.done [#allocation6], 512
    $region37: #{tpu_custom_call.1} parent=1 // pred_fallthru
      _
    // Predicated region
    $region38: #{tpu_custom_call.1} parent=1 // pred_check
      _
    $region39: #{tpu_custom_call.1} parent=1 // pred_check_branch
      %77 = sbr.rel (0) target = $region41
    $region40: #{tpu_custom_call.1} parent=1 // pred_region
      %78 = dma.done [#allocation6], 2048
    $region41: #{tpu_custom_call.1} parent=1 // pred_fallthru
      _
    // Predicated region
    $region42: #{tpu_custom_call.1} parent=1 // pred_check
      _
    $region43: #{tpu_custom_call.1} parent=1 // pred_check_branch
      %80 = sbr.rel (0) target = $region45
    $region44: #{tpu_custom_call.1} parent=1 // pred_region
      %81 = dma.done [#allocation9], 1024
    $region45: #{tpu_custom_call.1} parent=1 // pred_fallthru
      _
    %v83 = vld [vmem:[#allocation5] sm:$0xf]
    %v84 = vld [vmem:[#allocation5 + $0x4] sm:$0xf]
    %v85 = vld [vmem:[#allocation5 + $0x8] sm:$0xf]
    %v86 = vld [vmem:[#allocation5 + $0xc] sm:$0xf]
    %v87 = vld [vmem:[#allocation5 + $0x10] sm:$0xf]
    %v88 = vld [vmem:[#allocation5 + $0x14] sm:$0xf]
    %v89 = vld [vmem:[#allocation5 + $0x18] sm:$0xf]
    %v90 = vld [vmem:[#allocation5 + $0x1c] sm:$0xf]
    %v91 = vld [vmem:[#allocation2] sm:$0xf]
    %v92 = vld [vmem:[#allocation2 + $0x4] sm:$0xf]
    %v93 = vld [vmem:[#allocation2 + $0x8] sm:$0xf]
    %v94 = vld [vmem:[#allocation2 + $0xc] sm:$0xf]
    %v95 = vld [vmem:[#allocation2 + $0x10] sm:$0xf]
    %v96 = vld [vmem:[#allocation2 + $0x14] sm:$0xf]
    %v97 = vld [vmem:[#allocation2 + $0x18] sm:$0xf]
    %v98 = vld [vmem:[#allocation2 + $0x1c] sm:$0xf]
    %v99 = vld [vmem:[%s4] sm:$0x3]
    %v100 = vld [vmem:[#allocation7] sm:$0xf]
    %v101 = vld [vmem:[#allocation7 + $0x4] sm:$0xf]
    %v102 = vld [vmem:[#allocation7 + $0x8] sm:$0xf]
    %v103 = vld [vmem:[#allocation7 + $0xc] sm:$0xf]
    %v104 = vld [vmem:[#allocation7 + $0x10] sm:$0xf]
    %v105 = vld [vmem:[#allocation7 + $0x14] sm:$0xf]
    %v106 = vld [vmem:[#allocation7 + $0x18] sm:$0xf]
    %v107 = vld [vmem:[#allocation7 + $0x1c] sm:$0xf]
    %v108 = vld [vmem:[#allocation7 + $0x20] sm:$0xf]
    %v109 = vld [vmem:[#allocation7 + $0x24] sm:$0xf]
    %v110 = vld [vmem:[#allocation7 + $0x28] sm:$0xf]
    %v111 = vld [vmem:[#allocation7 + $0x2c] sm:$0xf]
    %v112 = vld [vmem:[#allocation7 + $0x30] sm:$0xf]
    %v113 = vld [vmem:[#allocation7 + $0x34] sm:$0xf]
    %v114 = vld [vmem:[#allocation7 + $0x38] sm:$0xf]
    %v115 = vld [vmem:[#allocation7 + $0x3c] sm:$0xf]
    %v124 = vunpack.c.l.b16 %v91
    %v125 = vunpack.c.l.b16 %v92
    %v126 = vunpack.c.l.b16 %v93
    %v127 = vunpack.c.l.b16 %v94
    %v128 = vunpack.c.l.b16 %v95
    %v129 = vunpack.c.l.b16 %v96
    %v130 = vunpack.c.l.b16 %v97
    %v131 = vunpack.c.l.b16 %v98
    %v132 = vpack.c.b16 %v125, %v124
    %v133 = vpack.c.b16 %v127, %v126
    %v134 = vpack.c.b16 %v129, %v128
    %v135 = vpack.c.b16 %v131, %v130
    %v156 = vunpack.c.l.b16 %v100
    %v157 = vunpack.c.l.b16 %v101
    %v158 = vunpack.c.l.b16 %v102
    %v159 = vunpack.c.l.b16 %v103
    %v160 = vunpack.c.l.b16 %v104
    %v161 = vunpack.c.l.b16 %v105
    %v162 = vunpack.c.l.b16 %v106
    %v163 = vunpack.c.l.b16 %v107
    %v164 = vunpack.c.l.b16 %v108
    %v165 = vunpack.c.l.b16 %v109
    %v166 = vunpack.c.l.b16 %v110
    %v167 = vunpack.c.l.b16 %v111
    %v168 = vunpack.c.l.b16 %v112
    %v169 = vunpack.c.l.b16 %v113
    %v170 = vunpack.c.l.b16 %v114
    %v171 = vunpack.c.l.b16 %v115
    %v172 = vpack.c.b16 %v157, %v156
    %v173 = vpack.c.b16 %v159, %v158
    %v174 = vpack.c.b16 %v161, %v160
    %v175 = vpack.c.b16 %v163, %v162
    %v176 = vpack.c.b16 %v165, %v164
    %v177 = vpack.c.b16 %v167, %v166
    %v178 = vpack.c.b16 %v169, %v168
    %v179 = vpack.c.b16 %v171, %v170
    %188 = vmatprep.subr.bf16.mxu0 0
    %189 = vmatpush1.bf16.msra.mxu0 %v172
    %190 = vmatprep.subr.bf16.mxu0 0
    %191 = vmatpush1.bf16.msra.mxu0 %v173
    %192 = vmatprep.subr.bf16.mxu0 0
    %193 = vmatpush1.bf16.msra.mxu0 %v174
    %194 = vmatprep.subr.bf16.mxu0 0
    %195 = vmatpush1.bf16.msra.mxu0 %v175
    %196 = vmatprep.subr.bf16.mxu0 0
    %197 = vmatpush1.bf16.msra.mxu0 %v176
    %198 = vmatprep.subr.bf16.mxu0 0
    %199 = vmatpush1.bf16.msra.mxu0 %v177
    %200 = vmatprep.subr.bf16.mxu0 0
    %201 = vmatpush1.bf16.msra.mxu0 %v178
    %202 = vmatprep.subr.bf16.mxu0 0
    %203 = vmatpush1.bf16.msra.mxu0 %v179
    %204 = vmatprep.subr.bf16.mxu0 0
    %205 = vmatpush1.bf16.msra.mxu0 0
    %206 = vmatprep.subr.bf16.mxu0 0
    %207 = vmatpush1.bf16.msra.mxu0 0
    %208 = vmatprep.subr.bf16.mxu0 0
    %209 = vmatpush1.bf16.msra.mxu0 0
    %210 = vmatprep.subr.bf16.mxu0 0
    %211 = vmatpush1.bf16.msra.mxu0 0
    %212 = vmatprep.subr.bf16.mxu0 0
    %213 = vmatpush1.bf16.msra.mxu0 0
    %214 = vmatprep.subr.bf16.mxu0 0
    %215 = vmatpush1.bf16.msra.mxu0 0
    %216 = vmatprep.subr.bf16.mxu0 0
    %217 = vmatpush1.bf16.msra.mxu0 0
    %218 = vmatprep.subr.bf16.mxu0 0
    %219 = vmatpush1.bf16.msra.mxu0 0
    %220 = vmatprep.mubr.bf16.mxu0 0
    %221 = vmatmul.mubr.bf16.gmra.mrb[0].mxu0 %v132
    %v222 = vpop.f32.mrb[0].mxu0
    %v223 = vadd.f32 0.0, %v222
    %v224 = vpop.f32.mrb[0].mxu0
    %v225 = vpop.f32.mrb[0].mxu0
    %v226 = vadd.f32 0.0, %v225
    %v227 = vpop.f32.mrb[0].mxu0
    %228 = vmatprep.mubr.bf16.mxu0 0
    %229 = vmatmul.mubr.bf16.gmra.mrb[0].mxu0 %v133
    %v230 = vpop.f32.mrb[0].mxu0
    %v231 = vadd.f32 0.0, %v230
    %v232 = vpop.f32.mrb[0].mxu0
    %v233 = vpop.f32.mrb[0].mxu0
    %v234 = vadd.f32 0.0, %v233
    %v235 = vpop.f32.mrb[0].mxu0
    %236 = vmatprep.mubr.bf16.mxu0 0
    %237 = vmatmul.mubr.bf16.gmra.mrb[0].mxu0 %v134
    %v238 = vpop.f32.mrb[0].mxu0
    %v239 = vadd.f32 0.0, %v238
    %v240 = vpop.f32.mrb[0].mxu0
    %v241 = vpop.f32.mrb[0].mxu0
    %v242 = vadd.f32 0.0, %v241
    %v243 = vpop.f32.mrb[0].mxu0
    %244 = vmatprep.mubr.bf16.mxu0 0
    %245 = vmatmul.mubr.bf16.gmra.mrb[0].mxu0 %v135
    %v246 = vpop.f32.mrb[0].mxu0
    %v247 = vadd.f32 0.0, %v246
    %v248 = vpop.f32.mrb[0].mxu0
    %v249 = vpop.f32.mrb[0].mxu0
    %v250 = vadd.f32 0.0, %v249
    %v251 = vpop.f32.mrb[0].mxu0
    %252 = vdwg.mxu0
    %v253 = vpack.c.bf16 %v226, %v223
    %v254 = vpack.c.bf16 %v234, %v231
    %v255 = vpack.c.bf16 %v242, %v239
    %v256 = vpack.c.bf16 %v250, %v247
    %v257 = vlaneseq
    %v258 = vshrl.u32 %v257, 7
    %v259 = vsub.s32 0, %v258
    %v260 = vrot.slane %v99, %v259
    %v269 = vunpack.c.l.b16 %v83
    %v270 = vunpack.c.l.b16 %v84
    %v271 = vunpack.c.l.b16 %v85
    %v272 = vunpack.c.l.b16 %v86
    %v273 = vunpack.c.l.b16 %v87
    %v274 = vunpack.c.l.b16 %v88
    %v275 = vunpack.c.l.b16 %v89
    %v276 = vunpack.c.l.b16 %v90
    %v277 = vpack.c.b16 %v270, %v269
    %v278 = vpack.c.b16 %v272, %v271
    %v279 = vpack.c.b16 %v274, %v273
    %v280 = vpack.c.b16 %v276, %v275
    %vm281 = vcmask 523264
    %v283 = vsel %vm281, %v277, 0
    %v286 = vsel %vm281, %v278, 0
    %v289 = vsel %vm281, %v279, 0
    %v292 = vsel %vm281, %v280, 0
    %294 = vmatprep.subr.bf16.mxu0 0
    %295 = vmatpush1.bf16.msra.mxu0 %v253
    %296 = vmatprep.subr.bf16.mxu0 0
    %297 = vmatpush1.bf16.msra.mxu0 %v254
    %298 = vmatprep.subr.bf16.mxu0 0
    %299 = vmatpush1.bf16.msra.mxu0 %v255
    %300 = vmatprep.subr.bf16.mxu0 0
    %301 = vmatpush1.bf16.msra.mxu0 %v256
    %302 = vmatprep.subr.bf16.mxu0 0
    %303 = vmatpush1.bf16.msra.mxu0 0
    %304 = vmatprep.subr.bf16.mxu0 0
    %305 = vmatpush1.bf16.msra.mxu0 0
    %306 = vmatprep.subr.bf16.mxu0 0
    %307 = vmatpush1.bf16.msra.mxu0 0
    %308 = vmatprep.subr.bf16.mxu0 0
    %309 = vmatpush1.bf16.msra.mxu0 0
    %310 = vmatprep.subr.bf16.mxu0 0
    %311 = vmatpush1.bf16.msra.mxu0 0
    %312 = vmatprep.subr.bf16.mxu0 0
    %313 = vmatpush1.bf16.msra.mxu0 0
    %314 = vmatprep.subr.bf16.mxu0 0
    %315 = vmatpush1.bf16.msra.mxu0 0
    %316 = vmatprep.subr.bf16.mxu0 0
    %317 = vmatpush1.bf16.msra.mxu0 0
    %318 = vmatprep.subr.bf16.mxu0 0
    %319 = vmatpush1.bf16.msra.mxu0 0
    %320 = vmatprep.subr.bf16.mxu0 0
    %321 = vmatpush1.bf16.msra.mxu0 0
    %322 = vmatprep.subr.bf16.mxu0 0
    %323 = vmatpush1.bf16.msra.mxu0 0
    %324 = vmatprep.subr.bf16.mxu0 0
    %325 = vmatpush1.bf16.msra.mxu0 0
    %326 = vmatprep.mubr.bf16.mxu0 0
    %327 = vmatmul.mubr.bf16.gmra.mrb[0].mxu0 %v283
    %v328 = vpop.f32.mrb[0].mxu0
    %v329 = vadd.f32 %v260, %v328
    %v330 = vpop.f32.mrb[0].mxu0
    %v331 = vpop.f32.mrb[0].mxu0
    %v332 = vadd.f32 %v260, %v331
    %v333 = vpop.f32.mrb[0].mxu0
    %334 = vmatprep.mubr.bf16.mxu0 0
    %335 = vmatmul.mubr.bf16.gmra.mrb[0].mxu0 %v286
    %v336 = vpop.f32.mrb[0].mxu0
    %v337 = vadd.f32 %v260, %v336
    %v338 = vpop.f32.mrb[0].mxu0
    %v339 = vpop.f32.mrb[0].mxu0
    %v340 = vadd.f32 %v260, %v339
    %v341 = vpop.f32.mrb[0].mxu0
    %342 = vmatprep.mubr.bf16.mxu0 0
    %343 = vmatmul.mubr.bf16.gmra.mrb[0].mxu0 %v289
    %v344 = vpop.f32.mrb[0].mxu0
    %v345 = vadd.f32 %v260, %v344
    %v346 = vpop.f32.mrb[0].mxu0
    %v347 = vpop.f32.mrb[0].mxu0
    %v348 = vadd.f32 %v260, %v347
    %v349 = vpop.f32.mrb[0].mxu0
    %350 = vmatprep.mubr.bf16.mxu0 0
    %351 = vmatmul.mubr.bf16.gmra.mrb[0].mxu0 %v292
    %v352 = vpop.f32.mrb[0].mxu0
    %v353 = vadd.f32 %v260, %v352
    %v354 = vpop.f32.mrb[0].mxu0
    %v355 = vpop.f32.mrb[0].mxu0
    %v356 = vadd.f32 %v260, %v355
    %v357 = vpop.f32.mrb[0].mxu0
    %358 = vdwg.mxu0
    %v359 = vmax.f32 %v329, 0.0
    %v360 = vmax.f32 %v332, 0.0
    %v361 = vmax.f32 %v337, 0.0
    %v362 = vmax.f32 %v340, 0.0
    %v363 = vmax.f32 %v345, 0.0
    %v364 = vmax.f32 %v348, 0.0
    %v365 = vmax.f32 %v353, 0.0
    %v366 = vmax.f32 %v356, 0.0
    %v367 = vpack.c.bf16 %v360, %v359
    %v368 = vpack.c.bf16 %v362, %v361
    %v369 = vpack.c.bf16 %v364, %v363
    %v370 = vpack.c.bf16 %v366, %v365
    %s371 = scalar_lea.vmem [#allocation7], 64
    %v372 = vld [vmem:[%s371] sm:$0xf]
    %v373 = vld [vmem:[%s371 + $0x4] sm:$0xf]
    %v374 = vld [vmem:[%s371 + $0x8] sm:$0xf]
    %v375 = vld [vmem:[%s371 + $0xc] sm:$0xf]
    %v376 = vld [vmem:[%s371 + $0x10] sm:$0xf]
    %v377 = vld [vmem:[%s371 + $0x14] sm:$0xf]
    %v378 = vld [vmem:[%s371 + $0x18] sm:$0xf]
    %v379 = vld [vmem:[%s371 + $0x1c] sm:$0xf]
    %v380 = vld [vmem:[%s371 + $0x20] sm:$0xf]
    %v381 = vld [vmem:[%s371 + $0x24] sm:$0xf]
    %v382 = vld [vmem:[%s371 + $0x28] sm:$0xf]
    %v383 = vld [vmem:[%s371 + $0x2c] sm:$0xf]
    %v384 = vld [vmem:[%s371 + $0x30] sm:$0xf]
    %v385 = vld [vmem:[%s371 + $0x34] sm:$0xf]
    %v386 = vld [vmem:[%s371 + $0x38] sm:$0xf]
    %v387 = vld [vmem:[%s371 + $0x3c] sm:$0xf]
    %v404 = vunpack.c.l.b16 %v372
    %v405 = vunpack.c.l.b16 %v373
    %v406 = vunpack.c.l.b16 %v374
    %v407 = vunpack.c.l.b16 %v375
    %v408 = vunpack.c.l.b16 %v376
    %v409 = vunpack.c.l.b16 %v377
    %v410 = vunpack.c.l.b16 %v378
    %v411 = vunpack.c.l.b16 %v379
    %v412 = vunpack.c.l.b16 %v380
    %v413 = vunpack.c.l.b16 %v381
    %v414 = vunpack.c.l.b16 %v382
    %v415 = vunpack.c.l.b16 %v383
    %v416 = vunpack.c.l.b16 %v384
    %v417 = vunpack.c.l.b16 %v385
    %v418 = vunpack.c.l.b16 %v386
    %v419 = vunpack.c.l.b16 %v387
    %v420 = vpack.c.b16 %v405, %v404
    %v421 = vpack.c.b16 %v407, %v406
    %v422 = vpack.c.b16 %v409, %v408
    %v423 = vpack.c.b16 %v411, %v410
    %v424 = vpack.c.b16 %v413, %v412
    %v425 = vpack.c.b16 %v415, %v414
    %v426 = vpack.c.b16 %v417, %v416
    %v427 = vpack.c.b16 %v419, %v418
    %436 = vmatprep.subr.bf16.mxu0 0
    %437 = vmatpush1.bf16.msra.mxu0 %v420
    %438 = vmatprep.subr.bf16.mxu0 0
    %439 = vmatpush1.bf16.msra.mxu0 %v421
    %440 = vmatprep.subr.bf16.mxu0 0
    %441 = vmatpush1.bf16.msra.mxu0 %v422
    %442 = vmatprep.subr.bf16.mxu0 0
    %443 = vmatpush1.bf16.msra.mxu0 %v423
    %444 = vmatprep.subr.bf16.mxu0 0
    %445 = vmatpush1.bf16.msra.mxu0 %v424
    %446 = vmatprep.subr.bf16.mxu0 0
    %447 = vmatpush1.bf16.msra.mxu0 %v425
    %448 = vmatprep.subr.bf16.mxu0 0
    %449 = vmatpush1.bf16.msra.mxu0 %v426
    %450 = vmatprep.subr.bf16.mxu0 0
    %451 = vmatpush1.bf16.msra.mxu0 %v427
    %452 = vmatprep.subr.bf16.mxu0 0
    %453 = vmatpush1.bf16.msra.mxu0 0
    %454 = vmatprep.subr.bf16.mxu0 0
    %455 = vmatpush1.bf16.msra.mxu0 0
    %456 = vmatprep.subr.bf16.mxu0 0
    %457 = vmatpush1.bf16.msra.mxu0 0
    %458 = vmatprep.subr.bf16.mxu0 0
    %459 = vmatpush1.bf16.msra.mxu0 0
    %460 = vmatprep.subr.bf16.mxu0 0
    %461 = vmatpush1.bf16.msra.mxu0 0
    %462 = vmatprep.subr.bf16.mxu0 0
    %463 = vmatpush1.bf16.msra.mxu0 0
    %464 = vmatprep.subr.bf16.mxu0 0
    %465 = vmatpush1.bf16.msra.mxu0 0
    %466 = vmatprep.subr.bf16.mxu0 0
    %467 = vmatpush1.bf16.msra.mxu0 0
    %468 = vmatprep.mubr.bf16.mxu0 0
    %469 = vmatmul.mubr.bf16.gmra.mrb[0].mxu0 %v367
    %v470 = vpop.f32.mrb[0].mxu0
    %v471 = vadd.f32 0.0, %v470
    %v472 = vpop.f32.mrb[0].mxu0
    %v473 = vpop.f32.mrb[0].mxu0
    %v474 = vadd.f32 0.0, %v473
    %v475 = vpop.f32.mrb[0].mxu0
    %476 = vmatprep.mubr.bf16.mxu0 0
    %477 = vmatmul.mubr.bf16.gmra.mrb[0].mxu0 %v368
    %v478 = vpop.f32.mrb[0].mxu0
    %v479 = vadd.f32 0.0, %v478
    %v480 = vpop.f32.mrb[0].mxu0
    %v481 = vpop.f32.mrb[0].mxu0
    %v482 = vadd.f32 0.0, %v481
    %v483 = vpop.f32.mrb[0].mxu0
    %484 = vmatprep.mubr.bf16.mxu0 0
    %485 = vmatmul.mubr.bf16.gmra.mrb[0].mxu0 %v369
    %v486 = vpop.f32.mrb[0].mxu0
    %v487 = vadd.f32 0.0, %v486
    %v488 = vpop.f32.mrb[0].mxu0
    %v489 = vpop.f32.mrb[0].mxu0
    %v490 = vadd.f32 0.0, %v489
    %v491 = vpop.f32.mrb[0].mxu0
    %492 = vmatprep.mubr.bf16.mxu0 0
    %493 = vmatmul.mubr.bf16.gmra.mrb[0].mxu0 %v370
    %v494 = vpop.f32.mrb[0].mxu0
    %v495 = vadd.f32 0.0, %v494
    %v496 = vpop.f32.mrb[0].mxu0
    %v497 = vpop.f32.mrb[0].mxu0
    %v498 = vadd.f32 0.0, %v497
    %v499 = vpop.f32.mrb[0].mxu0
    %500 = vdwg.mxu0
    %v501 = vpack.c.bf16 %v474, %v471
    %v502 = vpack.c.bf16 %v482, %v479
    %v503 = vpack.c.bf16 %v490, %v487
    %v504 = vpack.c.bf16 %v498, %v495
    %v505 = vlaneseq
    %v506 = vshrl.u32 %v505, 7
    %v507 = vsub.s32 1, %v506
    %v508 = vrot.slane %v99, %v507
    %509 = vmatprep.subr.bf16.mxu0 0
    %510 = vmatpush1.bf16.msra.mxu0 %v501
    %511 = vmatprep.subr.bf16.mxu0 0
    %512 = vmatpush1.bf16.msra.mxu0 %v502
    %513 = vmatprep.subr.bf16.mxu0 0
    %514 = vmatpush1.bf16.msra.mxu0 %v503
    %515 = vmatprep.subr.bf16.mxu0 0
    %516 = vmatpush1.bf16.msra.mxu0 %v504
    %517 = vmatprep.subr.bf16.mxu0 0
    %518 = vmatpush1.bf16.msra.mxu0 0
    %519 = vmatprep.subr.bf16.mxu0 0
    %520 = vmatpush1.bf16.msra.mxu0 0
    %521 = vmatprep.subr.bf16.mxu0 0
    %522 = vmatpush1.bf16.msra.mxu0 0
    %523 = vmatprep.subr.bf16.mxu0 0
    %524 = vmatpush1.bf16.msra.mxu0 0
    %525 = vmatprep.subr.bf16.mxu0 0
    %526 = vmatpush1.bf16.msra.mxu0 0
    %527 = vmatprep.subr.bf16.mxu0 0
    %528 = vmatpush1.bf16.msra.mxu0 0
    %529 = vmatprep.subr.bf16.mxu0 0
    %530 = vmatpush1.bf16.msra.mxu0 0
    %531 = vmatprep.subr.bf16.mxu0 0
    %532 = vmatpush1.bf16.msra.mxu0 0
    %533 = vmatprep.subr.bf16.mxu0 0
    %534 = vmatpush1.bf16.msra.mxu0 0
    %535 = vmatprep.subr.bf16.mxu0 0
    %536 = vmatpush1.bf16.msra.mxu0 0
    %537 = vmatprep.subr.bf16.mxu0 0
    %538 = vmatpush1.bf16.msra.mxu0 0
    %539 = vmatprep.subr.bf16.mxu0 0
    %540 = vmatpush1.bf16.msra.mxu0 0
    %541 = vmatprep.mubr.bf16.mxu0 0
    %542 = vmatmul.mubr.bf16.gmra.mrb[0].mxu0 %v283
    %v543 = vpop.f32.mrb[0].mxu0
    %v544 = vadd.f32 %v508, %v543
    %v545 = vpop.f32.mrb[0].mxu0
    %v546 = vpop.f32.mrb[0].mxu0
    %v547 = vadd.f32 %v508, %v546
    %v548 = vpop.f32.mrb[0].mxu0
    %549 = vmatprep.mubr.bf16.mxu0 0
    %550 = vmatmul.mubr.bf16.gmra.mrb[0].mxu0 %v286
    %v551 = vpop.f32.mrb[0].mxu0
    %v552 = vadd.f32 %v508, %v551
    %v553 = vpop.f32.mrb[0].mxu0
    %v554 = vpop.f32.mrb[0].mxu0
    %v555 = vadd.f32 %v508, %v554
    %v556 = vpop.f32.mrb[0].mxu0
    %557 = vmatprep.mubr.bf16.mxu0 0
    %558 = vmatmul.mubr.bf16.gmra.mrb[0].mxu0 %v289
    %v559 = vpop.f32.mrb[0].mxu0
    %v560 = vadd.f32 %v508, %v559
    %v561 = vpop.f32.mrb[0].mxu0
    %v562 = vpop.f32.mrb[0].mxu0
    %v563 = vadd.f32 %v508, %v562
    %v564 = vpop.f32.mrb[0].mxu0
    %565 = vmatprep.mubr.bf16.mxu0 0
    %566 = vmatmul.mubr.bf16.gmra.mrb[0].mxu0 %v292
    %v567 = vpop.f32.mrb[0].mxu0
    %v568 = vadd.f32 %v508, %v567
    %v569 = vpop.f32.mrb[0].mxu0
    %v570 = vpop.f32.mrb[0].mxu0
    %v571 = vadd.f32 %v508, %v570
    %v572 = vpop.f32.mrb[0].mxu0
    %573 = vdwg.mxu0
    %v574 = vmax.f32 %v544, 0.0
    %v575 = vmax.f32 %v547, 0.0
    %v576 = vmax.f32 %v552, 0.0
    %v577 = vmax.f32 %v555, 0.0
    %v578 = vmax.f32 %v560, 0.0
    %v579 = vmax.f32 %v563, 0.0
    %v580 = vmax.f32 %v568, 0.0
    %v581 = vmax.f32 %v571, 0.0
    %v582 = vpack.c.bf16 %v575, %v574
    %v583 = vpack.c.bf16 %v577, %v576
    %v584 = vpack.c.bf16 %v579, %v578
    %v585 = vpack.c.bf16 %v581, %v580
    %v586 = vld [vmem:[%s2] sm:$0xf]
    %v588 = vsel %vm281, %v586, 0
    %590 = vmatprep.subr.bf16.mxu0 0
    %591 = vmatpush1.bf16.msra.mxu0 %v582
    %592 = vmatprep.subr.bf16.mxu0 0
    %593 = vmatpush1.bf16.msra.mxu0 %v583
    %594 = vmatprep.subr.bf16.mxu0 0
    %595 = vmatpush1.bf16.msra.mxu0 %v584
    %596 = vmatprep.subr.bf16.mxu0 0
    %597 = vmatpush1.bf16.msra.mxu0 %v585
    %598 = vmatprep.subr.bf16.mxu0 0
    %599 = vmatpush1.bf16.msra.mxu0 0
    %600 = vmatprep.subr.bf16.mxu0 0
    %601 = vmatpush1.bf16.msra.mxu0 0
    %602 = vmatprep.subr.bf16.mxu0 0
    %603 = vmatpush1.bf16.msra.mxu0 0
    %604 = vmatprep.subr.bf16.mxu0 0
    %605 = vmatpush1.bf16.msra.mxu0 0
    %606 = vmatprep.subr.bf16.mxu0 0
    %607 = vmatpush1.bf16.msra.mxu0 0
    %608 = vmatprep.subr.bf16.mxu0 0
    %609 = vmatpush1.bf16.msra.mxu0 0
    %610 = vmatprep.subr.bf16.mxu0 0
    %611 = vmatpush1.bf16.msra.mxu0 0
    %612 = vmatprep.subr.bf16.mxu0 0
    %613 = vmatpush1.bf16.msra.mxu0 0
    %614 = vmatprep.subr.bf16.mxu0 0
    %615 = vmatpush1.bf16.msra.mxu0 0
    %616 = vmatprep.subr.bf16.mxu0 0
    %617 = vmatpush1.bf16.msra.mxu0 0
    %618 = vmatprep.subr.bf16.mxu0 0
    %619 = vmatpush1.bf16.msra.mxu0 0
    %620 = vmatprep.subr.bf16.mxu0 0
    %621 = vmatpush1.bf16.msra.mxu0 0
    %622 = vmatprep.mubr.bf16.mxu0 0
    %623 = vmatmul.mubr.bf16.gmra.mrb[0].mxu0 %v588
    %v624 = vpop.f32.mrb[0].mxu0
    %v625 = vadd.f32 0.0, %v624
    %v626 = vpop.f32.mrb[0].mxu0
    %v627 = vpop.f32.mrb[0].mxu0
    %v628 = vpop.f32.mrb[0].mxu0
    %629 = vdwg.mxu0
    %v630 = vpack.c.bf16 %v625, %v625
    %v631 = vld [vmem:[#allocation8] sm:$0xf]
    %v632 = vld [vmem:[#allocation8 + $0x4] sm:$0xf]
    %v633 = vld [vmem:[#allocation8 + $0x8] sm:$0xf]
    %v634 = vld [vmem:[#allocation8 + $0xc] sm:$0xf]
    %v635 = vld [vmem:[#allocation8 + $0x10] sm:$0xf]
    %v636 = vld [vmem:[#allocation8 + $0x14] sm:$0xf]
    %v637 = vld [vmem:[#allocation8 + $0x18] sm:$0xf]
    %v638 = vld [vmem:[#allocation8 + $0x1c] sm:$0xf]
    %v639 = vld [vmem:[#allocation8 + $0x20] sm:$0xf]
    %v640 = vld [vmem:[#allocation8 + $0x24] sm:$0xf]
    %v641 = vld [vmem:[#allocation8 + $0x28] sm:$0xf]
    %v642 = vld [vmem:[#allocation8 + $0x2c] sm:$0xf]
    %v643 = vld [vmem:[#allocation8 + $0x30] sm:$0xf]
    %v644 = vld [vmem:[#allocation8 + $0x34] sm:$0xf]
    %v645 = vld [vmem:[#allocation8 + $0x38] sm:$0xf]
    %v646 = vld [vmem:[#allocation8 + $0x3c] sm:$0xf]
    %v647 = vld [vmem:[%s6] sm:$0x1]
    %v649 = vlaneseq
    %v650 = vshrl.u32 %v649, 7
    %v651 = vsub.s32 0, %v650
    %v652 = vrot.slane %v647, %v651
    %v670 = vunpack.c.l.b16 %v631
    %v671 = vunpack.c.l.b16 %v632
    %v672 = vunpack.c.l.b16 %v633
    %v673 = vunpack.c.l.b16 %v634
    %v674 = vunpack.c.l.b16 %v635
    %v675 = vunpack.c.l.b16 %v636
    %v676 = vunpack.c.l.b16 %v637
    %v677 = vunpack.c.l.b16 %v638
    %v678 = vunpack.c.l.b16 %v639
    %v679 = vunpack.c.l.b16 %v640
    %v680 = vunpack.c.l.b16 %v641
    %v681 = vunpack.c.l.b16 %v642
    %v682 = vunpack.c.l.b16 %v643
    %v683 = vunpack.c.l.b16 %v644
    %v684 = vunpack.c.l.b16 %v645
    %v685 = vunpack.c.l.b16 %v646
    %v686 = vpack.c.b16 %v671, %v670
    %v687 = vpack.c.b16 %v673, %v672
    %v688 = vpack.c.b16 %v675, %v674
    %v689 = vpack.c.b16 %v677, %v676
    %v690 = vpack.c.b16 %v679, %v678
    %v691 = vpack.c.b16 %v681, %v680
    %v692 = vpack.c.b16 %v683, %v682
    %v693 = vpack.c.b16 %v685, %v684
    %702 = vmatprep.subr.bf16.mxu0 0
    %703 = vmatpush1.bf16.msra.mxu0 %v686
    %704 = vmatprep.subr.bf16.mxu0 0
    %705 = vmatpush1.bf16.msra.mxu0 %v687
    %706 = vmatprep.subr.bf16.mxu0 0
    %707 = vmatpush1.bf16.msra.mxu0 %v688
    %708 = vmatprep.subr.bf16.mxu0 0
    %709 = vmatpush1.bf16.msra.mxu0 %v689
    %710 = vmatprep.subr.bf16.mxu0 0
    %711 = vmatpush1.bf16.msra.mxu0 %v690
    %712 = vmatprep.subr.bf16.mxu0 0
    %713 = vmatpush1.bf16.msra.mxu0 %v691
    %714 = vmatprep.subr.bf16.mxu0 0
    %715 = vmatpush1.bf16.msra.mxu0 %v692
    %716 = vmatprep.subr.bf16.mxu0 0
    %717 = vmatpush1.bf16.msra.mxu0 %v693
    %718 = vmatprep.subr.bf16.mxu0 0
    %719 = vmatpush1.bf16.msra.mxu0 0
    %720 = vmatprep.subr.bf16.mxu0 0
    %721 = vmatpush1.bf16.msra.mxu0 0
    %722 = vmatprep.subr.bf16.mxu0 0
    %723 = vmatpush1.bf16.msra.mxu0 0
    %724 = vmatprep.subr.bf16.mxu0 0
    %725 = vmatpush1.bf16.msra.mxu0 0
    %726 = vmatprep.subr.bf16.mxu0 0
    %727 = vmatpush1.bf16.msra.mxu0 0
    %728 = vmatprep.subr.bf16.mxu0 0
    %729 = vmatpush1.bf16.msra.mxu0 0
    %730 = vmatprep.subr.bf16.mxu0 0
    %731 = vmatpush1.bf16.msra.mxu0 0
    %732 = vmatprep.subr.bf16.mxu0 0
    %733 = vmatpush1.bf16.msra.mxu0 0
    %734 = vmatprep.mubr.bf16.mxu0 0
    %735 = vmatmul.mubr.bf16.gmra.mrb[0].mxu0 %v630
    %v736 = vpop.f32.mrb[0].mxu0
    %v737 = vadd.f32 %v652, %v736
    %v738 = vpop.f32.mrb[0].mxu0
    %v739 = vpop.f32.mrb[0].mxu0
    %v740 = vpop.f32.mrb[0].mxu0
    %741 = vdwg.mxu0
    %742 = vst [vmem:[#allocation10] sm:$0xff] %v737
    // Predicated region
    $region46: #{tpu_custom_call.1} parent=1 // pred_check
      _
    $region47: #{tpu_custom_call.1} parent=1 // pred_check_branch
      %744 = sbr.rel (0) target = $region49
    $region48: #{tpu_custom_call.1} parent=1 // pred_region
      %s746 = ssub.s32 128, 128
      %747 = vsyncadd [#allocation4], %s746
      %s749 = sshll.u32 [#allocation10], 4
      %s750 = int_to_ptr.vmem [resolvable:$true] %s749
      %752 = dma.vmem_to_hbm [thread:$0]  %s750, 128, %s7, [#allocation4]
    $region49: #{tpu_custom_call.1} parent=1 // pred_fallthru
      _
    // Predicated region
    $region50: #{tpu_custom_call.1} parent=1 // pred_check
      _
    $region51: #{tpu_custom_call.1} parent=1 // pred_check_branch
      %754 = sbr.rel (0) target = $region53
    $region52: #{tpu_custom_call.1} parent=1 // pred_region
      %755 = dma.done [#allocation4], 128
    $region53: #{tpu_custom_call.1} parent=1 // pred_fallthru
      _
    %756 = vsyncpa [#allocation3], 1
    %757 = vsyncpa [#allocation6], 1
    %758 = vsyncpa [#allocation9], 1
    %759 = vsyncpa [#allocation4], 1

</llo_original>
